<compile_context>
chip_gen: v7x
topology: tpu7x:2x2x1
jax: 0.10.0
libtpu: 0.0.40
codegen_flags: <defaults>
</compile_context>

<pallas_src>
import functools

import jax
import jax.numpy as jnp
from jax.experimental import pallas as pl
from jax.experimental.pallas import tpu as pltpu


def rnn_kernel(x_ref, wih_ref, whh_ref, b_ref, wfc_ref, bfc_ref, out_ref,
               *, batch, seq_len):
    """Fused SimpleRNN forward (single invocation, everything VMEM resident).

    x_ref  : (S*B, I)  time-major 2D input (row block t = timestep t)
    wih_ref: (I, H)    W_ih^T
    whh_ref: (H, H)    W_hh^T
    b_ref  : (1, H)    b_ih + b_hh (merged)
    wfc_ref: (H, O)    W_fc^T
    bfc_ref: (1, O)
    out_ref: (S*B, O)  time-major 2D output
    """
    H = whh_ref.shape[0]

    # 1) Time-independent input projection for ALL timesteps in one matmul.
    xproj = (jnp.dot(x_ref[...], wih_ref[...],
                     preferred_element_type=jnp.float32)
             + b_ref[...])                                      # (S*B, H)

    # 2) The only truly sequential part: the hidden-state recurrence.
    #    Hidden states stay in vregs (B*S*H*4 = 2 KB total), no VMEM scratch.
    #    S is static -> the Python loop fully unrolls at trace time.
    whh = whh_ref[...]                                          # loop-invariant
    h = jnp.zeros((batch, H), jnp.float32)
    hs = []
    for t in range(seq_len):
        x_t = xproj[t * batch:(t + 1) * batch, :]               # contiguous rows
        h = jnp.tanh(x_t + jnp.dot(h, whh,
                                   preferred_element_type=jnp.float32))
        hs.append(h)

    # 3) Time-independent FC projection for ALL timesteps, single 2D store.
    h_all = jnp.concatenate(hs, axis=0)                         # (S*B, H)
    out_ref[...] = (jnp.dot(h_all, wfc_ref[...],
                            preferred_element_type=jnp.float32)
                    + bfc_ref[...])                             # (S*B, O)


@jax.jit
def simple_rnn_forward(x, w_ih, w_hh, b_ih, b_hh, w_fc, b_fc):
    """x: (B, S, I) float32 -> (B, S, O) float32 (matches PyTorch forward)."""
    B, S, I = x.shape
    H = w_ih.shape[0]
    O = w_fc.shape[0]

    # All layout plumbing in the wrapper (XLA), none inside the kernel:
    #  * pre-transpose the weights so every in-kernel matmul is (rows,K)@(K,cols)
    #  * merge the two RNN biases
    #  * feed x as a 2D time-major (S*B, I) slab.
    wih_t = jnp.transpose(w_ih)            # (I, H)
    whh_t = jnp.transpose(w_hh)            # (H, H)
    wfc_t = jnp.transpose(w_fc)            # (H, O)
    b_rnn = (b_ih + b_hh).reshape(1, H)    # (1, H)
    bfc2 = b_fc.reshape(1, O)              # (1, O)
    x_tm = jnp.transpose(x, (1, 0, 2)).reshape(S * B, I)   # time-major 2D

    out_tm = pl.pallas_call(
        functools.partial(rnn_kernel, batch=B, seq_len=S),
        out_shape=jax.ShapeDtypeStruct((S * B, O), jnp.float32),
        # No grid: single invocation, all operands resident in VMEM
        # (weights loaded once, never double-buffered).
        in_specs=[pl.BlockSpec(memory_space=pltpu.MemorySpace.VMEM)] * 6,
        out_specs=pl.BlockSpec(memory_space=pltpu.MemorySpace.VMEM),
    )(x_tm, wih_t, whh_t, b_rnn, wfc_t, bfc2)

    # Back to batch-first (B, S, O) in the wrapper.
    return jnp.transpose(out_tm.reshape(S, B, O), (1, 0, 2))


def _reference_forward(x, w_ih, w_hh, b_ih, b_hh, w_fc, b_fc):
    """Pure-JAX reference mirroring torch.nn.RNN(batch_first=True) + Linear."""
    B, S, I = x.shape
    H = w_ih.shape[0]

    def step(h, x_t):
        h_new = jnp.tanh(x_t @ w_ih.T + b_ih + h @ w_hh.T + b_hh)
        return h_new, h_new

    h0 = jnp.zeros((B, H), jnp.float32)
    _, hs = jax.lax.scan(step, h0, jnp.transpose(x, (1, 0, 2)))  # (S, B, H)
    hs = jnp.transpose(hs, (1, 0, 2))                            # (B, S, H)
    return hs @ w_fc.T + b_fc


if __name__ == "__main__":
    # Small shapes consistent with the module: batch=2, seq=8, input=16,
    # hidden=32, output=4.
    B, S, I, H, O = 2, 8, 16, 32, 4

    key = jax.random.PRNGKey(0)
    keys = jax.random.split(key, 8)

    # Deterministic init mimicking PyTorch's uniform(-1/sqrt(H), 1/sqrt(H)).
    k_rnn = 1.0 / jnp.sqrt(jnp.float32(H))
    k_fc = 1.0 / jnp.sqrt(jnp.float32(H))
    w_ih = jax.random.uniform(keys[0], (H, I), jnp.float32, -k_rnn, k_rnn)
    w_hh = jax.random.uniform(keys[1], (H, H), jnp.float32, -k_rnn, k_rnn)
    b_ih = jax.random.uniform(keys[2], (H,), jnp.float32, -k_rnn, k_rnn)
    b_hh = jax.random.uniform(keys[3], (H,), jnp.float32, -k_rnn, k_rnn)
    w_fc = jax.random.uniform(keys[4], (O, H), jnp.float32, -k_fc, k_fc)
    b_fc = jax.random.uniform(keys[5], (O,), jnp.float32, -k_fc, k_fc)

    x = jax.random.normal(keys[6], (B, S, I), jnp.float32)

    out = simple_rnn_forward(x, w_ih, w_hh, b_ih, b_hh, w_fc, b_fc)
    out = jax.block_until_ready(out)

    ref = _reference_forward(x, w_ih, w_hh, b_ih, b_hh, w_fc, b_fc)
    assert out.shape == (B, S, O)
    assert jnp.allclose(out, ref, atol=1e-5, rtol=1e-5), "mismatch vs reference"

    print("KERNEL_OK")
</pallas_src>

<mosaic_0001>
module attributes {stable_mosaic.version = 11 : i64} {
  func.func @rnn_kernel(%arg0: memref<16x16xf32, #tpu.memory_space<vmem>>, %arg1: memref<16x32xf32, #tpu.memory_space<vmem>>, %arg2: memref<32x32xf32, #tpu.memory_space<vmem>>, %arg3: memref<1x32xf32, #tpu.memory_space<vmem>>, %arg4: memref<32x4xf32, #tpu.memory_space<vmem>>, %arg5: memref<1x4xf32, #tpu.memory_space<vmem>>, %arg6: memref<16x4xf32, #tpu.memory_space<vmem>>) attributes {dimension_semantics = [], scalar_prefetch = 0 : i64, scratch_operands = 0 : i64, tpu.core_type = #tpu.core_type<tc>} {
    %c0 = arith.constant 0 : index
    %c0_0 = arith.constant 0 : index
    %0 = vector.load %arg0[%c0, %c0_0] : memref<16x16xf32, #tpu.memory_space<vmem>>, vector<16x16xf32>
    %c0_1 = arith.constant 0 : index
    %c0_2 = arith.constant 0 : index
    %1 = vector.load %arg1[%c0_1, %c0_2] : memref<16x32xf32, #tpu.memory_space<vmem>>, vector<16x32xf32>
    %cst = arith.constant dense<0.000000e+00> : vector<16x32xf32>
    %2 = tpu.matmul %0, %1, %cst {dimension_numbers = #tpu.dot_dimension_numbers<[1], [0], [0], [1], [0, 0, 1, 1], [], []>} : vector<16x16xf32>, vector<16x32xf32>, vector<16x32xf32> -> vector<16x32xf32>
    %c0_3 = arith.constant 0 : index
    %c0_4 = arith.constant 0 : index
    %3 = vector.load %arg3[%c0_3, %c0_4] : memref<1x32xf32, #tpu.memory_space<vmem>>, vector<1x32xf32>
    %4 = vector.broadcast %3 : vector<1x32xf32> to vector<16x32xf32>
    %5 = arith.addf %2, %4 : vector<16x32xf32>
    %c0_5 = arith.constant 0 : index
    %c0_6 = arith.constant 0 : index
    %6 = vector.load %arg2[%c0_5, %c0_6] : memref<32x32xf32, #tpu.memory_space<vmem>>, vector<32x32xf32>
    %cst_7 = arith.constant 0.000000e+00 : f32
    %7 = vector.broadcast %cst_7 : f32 to vector<2x32xf32>
    %8 = vector.extract_strided_slice %5 {offsets = [0, 0], sizes = [2, 32], strides = [1, 1]} : vector<16x32xf32> to vector<2x32xf32>
    %cst_8 = arith.constant dense<0.000000e+00> : vector<2x32xf32>
    %9 = tpu.matmul %7, %6, %cst_8 {dimension_numbers = #tpu.dot_dimension_numbers<[1], [0], [0], [1], [0, 0, 1, 1], [], []>} : vector<2x32xf32>, vector<32x32xf32>, vector<2x32xf32> -> vector<2x32xf32>
    %10 = arith.addf %8, %9 : vector<2x32xf32>
    %11 = math.tanh %10 : vector<2x32xf32>
    %12 = vector.extract_strided_slice %5 {offsets = [2, 0], sizes = [2, 32], strides = [1, 1]} : vector<16x32xf32> to vector<2x32xf32>
    %cst_9 = arith.constant dense<0.000000e+00> : vector<2x32xf32>
    %13 = tpu.matmul %11, %6, %cst_9 {dimension_numbers = #tpu.dot_dimension_numbers<[1], [0], [0], [1], [0, 0, 1, 1], [], []>} : vector<2x32xf32>, vector<32x32xf32>, vector<2x32xf32> -> vector<2x32xf32>
    %14 = arith.addf %12, %13 : vector<2x32xf32>
    %15 = math.tanh %14 : vector<2x32xf32>
    %16 = vector.extract_strided_slice %5 {offsets = [4, 0], sizes = [2, 32], strides = [1, 1]} : vector<16x32xf32> to vector<2x32xf32>
    %cst_10 = arith.constant dense<0.000000e+00> : vector<2x32xf32>
    %17 = tpu.matmul %15, %6, %cst_10 {dimension_numbers = #tpu.dot_dimension_numbers<[1], [0], [0], [1], [0, 0, 1, 1], [], []>} : vector<2x32xf32>, vector<32x32xf32>, vector<2x32xf32> -> vector<2x32xf32>
    %18 = arith.addf %16, %17 : vector<2x32xf32>
    %19 = math.tanh %18 : vector<2x32xf32>
    %20 = vector.extract_strided_slice %5 {offsets = [6, 0], sizes = [2, 32], strides = [1, 1]} : vector<16x32xf32> to vector<2x32xf32>
    %cst_11 = arith.constant dense<0.000000e+00> : vector<2x32xf32>
    %21 = tpu.matmul %19, %6, %cst_11 {dimension_numbers = #tpu.dot_dimension_numbers<[1], [0], [0], [1], [0, 0, 1, 1], [], []>} : vector<2x32xf32>, vector<32x32xf32>, vector<2x32xf32> -> vector<2x32xf32>
    %22 = arith.addf %20, %21 : vector<2x32xf32>
    %23 = math.tanh %22 : vector<2x32xf32>
    %24 = vector.extract_strided_slice %5 {offsets = [8, 0], sizes = [2, 32], strides = [1, 1]} : vector<16x32xf32> to vector<2x32xf32>
    %cst_12 = arith.constant dense<0.000000e+00> : vector<2x32xf32>
    %25 = tpu.matmul %23, %6, %cst_12 {dimension_numbers = #tpu.dot_dimension_numbers<[1], [0], [0], [1], [0, 0, 1, 1], [], []>} : vector<2x32xf32>, vector<32x32xf32>, vector<2x32xf32> -> vector<2x32xf32>
    %26 = arith.addf %24, %25 : vector<2x32xf32>
    %27 = math.tanh %26 : vector<2x32xf32>
    %28 = vector.extract_strided_slice %5 {offsets = [10, 0], sizes = [2, 32], strides = [1, 1]} : vector<16x32xf32> to vector<2x32xf32>
    %cst_13 = arith.constant dense<0.000000e+00> : vector<2x32xf32>
    %29 = tpu.matmul %27, %6, %cst_13 {dimension_numbers = #tpu.dot_dimension_numbers<[1], [0], [0], [1], [0, 0, 1, 1], [], []>} : vector<2x32xf32>, vector<32x32xf32>, vector<2x32xf32> -> vector<2x32xf32>
    %30 = arith.addf %28, %29 : vector<2x32xf32>
    %31 = math.tanh %30 : vector<2x32xf32>
    %32 = vector.extract_strided_slice %5 {offsets = [12, 0], sizes = [2, 32], strides = [1, 1]} : vector<16x32xf32> to vector<2x32xf32>
    %cst_14 = arith.constant dense<0.000000e+00> : vector<2x32xf32>
    %33 = tpu.matmul %31, %6, %cst_14 {dimension_numbers = #tpu.dot_dimension_numbers<[1], [0], [0], [1], [0, 0, 1, 1], [], []>} : vector<2x32xf32>, vector<32x32xf32>, vector<2x32xf32> -> vector<2x32xf32>
    %34 = arith.addf %32, %33 : vector<2x32xf32>
    %35 = math.tanh %34 : vector<2x32xf32>
    %36 = vector.extract_strided_slice %5 {offsets = [14, 0], sizes = [2, 32], strides = [1, 1]} : vector<16x32xf32> to vector<2x32xf32>
    %cst_15 = arith.constant dense<0.000000e+00> : vector<2x32xf32>
    %37 = tpu.matmul %35, %6, %cst_15 {dimension_numbers = #tpu.dot_dimension_numbers<[1], [0], [0], [1], [0, 0, 1, 1], [], []>} : vector<2x32xf32>, vector<32x32xf32>, vector<2x32xf32> -> vector<2x32xf32>
    %38 = arith.addf %36, %37 : vector<2x32xf32>
    %39 = math.tanh %38 : vector<2x32xf32>
    %40 = tpu.concatenate %11, %15, %19, %23, %27, %31, %35, %39 in 0 : vector<2x32xf32>, vector<2x32xf32>, vector<2x32xf32>, vector<2x32xf32>, vector<2x32xf32>, vector<2x32xf32>, vector<2x32xf32>, vector<2x32xf32> -> vector<16x32xf32>
    %c0_16 = arith.constant 0 : index
    %c0_17 = arith.constant 0 : index
    %41 = vector.load %arg4[%c0_16, %c0_17] : memref<32x4xf32, #tpu.memory_space<vmem>>, vector<32x4xf32>
    %cst_18 = arith.constant dense<0.000000e+00> : vector<16x4xf32>
    %42 = tpu.matmul %40, %41, %cst_18 {dimension_numbers = #tpu.dot_dimension_numbers<[1], [0], [0], [1], [0, 0, 1, 1], [], []>} : vector<16x32xf32>, vector<32x4xf32>, vector<16x4xf32> -> vector<16x4xf32>
    %c0_19 = arith.constant 0 : index
    %c0_20 = arith.constant 0 : index
    %43 = vector.load %arg5[%c0_19, %c0_20] : memref<1x4xf32, #tpu.memory_space<vmem>>, vector<1x4xf32>
    %44 = vector.broadcast %43 : vector<1x4xf32> to vector<16x4xf32>
    %45 = arith.addf %42, %44 : vector<16x4xf32>
    %c0_21 = arith.constant 0 : index
    %c0_22 = arith.constant 0 : index
    %46 = vector.load %arg6[%c0_21, %c0_22] : memref<16x4xf32, #tpu.memory_space<vmem>>, vector<16x4xf32>
    tpu.vector_store %arg6[%c0_21, %c0_22], %45 {strides = array<i32>} : memref<16x4xf32, #tpu.memory_space<vmem>>, vector<16x4xf32>,
    return
  }
}

</mosaic_0001>

<llo_original>
// kernel: simple_rnn_forward.1
$region0: #{simple_rnn_forward.1}
  #allocation0 [shape = 'u32[]', space=smem, size = 0x4, offset = 0x4, fixed_abs, tag = 'smem constant byte address 0x4 - core index']
  #allocation1 [shape = 'u32[144,128]{1,0:T(1,128)}', space=vmem, size = 0x12000, scoped, tag = 'internal scratch']
  %s0 = inlined_call_operand.vmem [shape: f32[16,16], index: 0, kind: input, shape index: {}]
  %s1 = inlined_call_operand.vmem [shape: f32[16,32], index: 1, kind: input, shape index: {}]
  %s2 = inlined_call_operand.vmem [shape: f32[32,32], index: 2, kind: input, shape index: {}]
  %s3 = inlined_call_operand.vmem [shape: f32[1,32], index: 3, kind: input, shape index: {}]
  %s4 = inlined_call_operand.vmem [shape: f32[32,4], index: 4, kind: input, shape index: {}]
  %s5 = inlined_call_operand.vmem [shape: f32[1,4], index: 5, kind: input, shape index: {}]
  %s6 = inlined_call_operand.vmem [shape: f32[16,4], index: 6, kind: output, shape index: {}]
  %s7 = sld [smem:[#allocation0]]
  $region34: #{simple_rnn_forward.1} parent=0
    _
  %s9 = ssub.s32 1, %s7
  %s10 = scalar_select 0, %s9, %s7
  // Predicated region
  $region2: #{simple_rnn_forward.1} parent=0 // pred_check
    _
  $region3: #{simple_rnn_forward.1} parent=0 // pred_check_branch
    %12 = sbr.rel (0) target = $region5
  $region4: #{simple_rnn_forward.1} parent=0 // pred_region
    _
  $region5: #{simple_rnn_forward.1} parent=0 // pred_fallthru
    _
  // Predicated region
  $region6: #{simple_rnn_forward.1} parent=0 // pred_check
    _
  $region7: #{simple_rnn_forward.1} parent=0 // pred_check_branch
    %14 = sbr.rel (0) target = $region9
  $region8: #{simple_rnn_forward.1} parent=0 // pred_region
    _
  $region9: #{simple_rnn_forward.1} parent=0 // pred_fallthru
    _
  // Predicated region
  $region10: #{simple_rnn_forward.1} parent=0 // pred_check
    _
  $region11: #{simple_rnn_forward.1} parent=0 // pred_check_branch
    %16 = sbr.rel (0) target = $region13
  $region12: #{simple_rnn_forward.1} parent=0 // pred_region
    _
  $region13: #{simple_rnn_forward.1} parent=0 // pred_fallthru
    _
  // Predicated region
  $region14: #{simple_rnn_forward.1} parent=0 // pred_check
    _
  $region15: #{simple_rnn_forward.1} parent=0 // pred_check_branch
    %18 = sbr.rel (0) target = $region17
  $region16: #{simple_rnn_forward.1} parent=0 // pred_region
    _
  $region17: #{simple_rnn_forward.1} parent=0 // pred_fallthru
    _
  // Predicated region
  $region18: #{simple_rnn_forward.1} parent=0 // pred_check
    _
  $region19: #{simple_rnn_forward.1} parent=0 // pred_check_branch
    %20 = sbr.rel (0) target = $region21
  $region20: #{simple_rnn_forward.1} parent=0 // pred_region
    _
  $region21: #{simple_rnn_forward.1} parent=0 // pred_fallthru
    _
  // Predicated region
  $region22: #{simple_rnn_forward.1} parent=0 // pred_check
    _
  $region23: #{simple_rnn_forward.1} parent=0 // pred_check_branch
    %22 = sbr.rel (0) target = $region25
  $region24: #{simple_rnn_forward.1} parent=0 // pred_region
    _
  $region25: #{simple_rnn_forward.1} parent=0 // pred_fallthru
    _
  %v23 = vld [vmem:[%s0] sm:$0xff]
  %v24 = vld [vmem:[%s0 + $0x8] sm:$0xff]
  %v25 = vld [vmem:[%s1] sm:$0xff]
  %v26 = vld [vmem:[%s1 + $0x8] sm:$0xff]
  %v27 = vld [vmem:[%s3] sm:$0x1]
  %v29 = vlaneseq
  %v30 = vshrl.u32 %v29, 7
  %v31 = vsub.s32 0, %v30
  %v32 = vrot.slane %v27, %v31
  %vm34 = vcmask 130048
  %v36 = vsel %vm34, %v23, 0
  %v39 = vsel %vm34, %v24, 0
  %41 = vmatprep.subr.mxu0 0.0
  %42 = vmatpush1.msra.mxu0 %v25
  %43 = vmatprep.subr.mxu0 0.0
  %44 = vmatpush1.msra.mxu0 %v26
  %45 = vmatprep.subr.mxu0 0.0
  %46 = vmatpush1.msra.mxu0 0.0
  %47 = vmatprep.subr.mxu0 0.0
  %48 = vmatpush1.msra.mxu0 0.0
  %49 = vmatprep.subr.mxu0 0.0
  %50 = vmatpush1.msra.mxu0 0.0
  %51 = vmatprep.subr.mxu0 0.0
  %52 = vmatpush1.msra.mxu0 0.0
  %53 = vmatprep.subr.mxu0 0.0
  %54 = vmatpush1.msra.mxu0 0.0
  %55 = vmatprep.subr.mxu0 0.0
  %56 = vmatpush1.msra.mxu0 0.0
  %57 = vmatprep.subr.mxu0 0.0
  %58 = vmatpush1.msra.mxu0 0.0
  %59 = vmatprep.subr.mxu0 0.0
  %60 = vmatpush1.msra.mxu0 0.0
  %61 = vmatprep.subr.mxu0 0.0
  %62 = vmatpush1.msra.mxu0 0.0
  %63 = vmatprep.subr.mxu0 0.0
  %64 = vmatpush1.msra.mxu0 0.0
  %65 = vmatprep.subr.mxu0 0.0
  %66 = vmatpush1.msra.mxu0 0.0
  %67 = vmatprep.subr.mxu0 0.0
  %68 = vmatpush1.msra.mxu0 0.0
  %69 = vmatprep.subr.mxu0 0.0
  %70 = vmatpush1.msra.mxu0 0.0
  %71 = vmatprep.subr.mxu0 0.0
  %72 = vmatpush1.msra.mxu0 0.0
  %73 = vmatprep.subr.mxu0 0.0
  %74 = vmatpush1.msra.mxu0 0.0
  %75 = vmatprep.subr.mxu0 0.0
  %76 = vmatpush1.msra.mxu0 0.0
  %77 = vmatprep.subr.mxu0 0.0
  %78 = vmatpush1.msra.mxu0 0.0
  %79 = vmatprep.subr.mxu0 0.0
  %80 = vmatpush1.msra.mxu0 0.0
  %81 = vmatprep.subr.mxu0 0.0
  %82 = vmatpush1.msra.mxu0 0.0
  %83 = vmatprep.subr.mxu0 0.0
  %84 = vmatpush1.msra.mxu0 0.0
  %85 = vmatprep.subr.mxu0 0.0
  %86 = vmatpush1.msra.mxu0 0.0
  %87 = vmatprep.subr.mxu0 0.0
  %88 = vmatpush1.msra.mxu0 0.0
  %89 = vmatprep.subr.mxu0 0.0
  %90 = vmatpush1.msra.mxu0 0.0
  %91 = vmatprep.subr.mxu0 0.0
  %92 = vmatpush1.msra.mxu0 0.0
  %93 = vmatprep.subr.mxu0 0.0
  %94 = vmatpush1.msra.mxu0 0.0
  %95 = vmatprep.subr.mxu0 0.0
  %96 = vmatpush1.msra.mxu0 0.0
  %97 = vmatprep.subr.mxu0 0.0
  %98 = vmatpush1.msra.mxu0 0.0
  %99 = vmatprep.subr.mxu0 0.0
  %100 = vmatpush1.msra.mxu0 0.0
  %101 = vmatprep.subr.mxu0 0.0
  %102 = vmatpush1.msra.mxu0 0.0
  %103 = vmatprep.subr.mxu0 0.0
  %104 = vmatpush1.msra.mxu0 0.0
  %105 = vmatprep.mubr.f32.mxu0 0.0
  %106 = vmatmul.mubr.f32.gmra.mrb[0].mxu0 %v36
  %v107 = vpop.f32.mrb[0].mxu0
  %v108 = vadd.f32 %v32, %v107
  %v109 = vpop.f32.mrb[0].mxu0
  %110 = vmatprep.mubr.f32.mxu0 0.0
  %111 = vmatmul.mubr.f32.gmra.mrb[0].mxu0 %v39
  %v112 = vpop.f32.mrb[0].mxu0
  %v113 = vadd.f32 %v32, %v112
  %v114 = vpop.f32.mrb[0].mxu0
  %115 = vdwg.mxu0
  %v116 = vld [vmem:[%s2] sm:$0xff]
  %v117 = vld [vmem:[%s2 + $0x8] sm:$0xff]
  %v118 = vld [vmem:[%s2 + $0x10] sm:$0xff]
  %v119 = vld [vmem:[%s2 + $0x18] sm:$0xff]
  %vm120 = vcmask 261120
  %v122 = vsel %vm120, 0.0, 0
  %124 = vmatprep.subr.mxu0 0.0
  %125 = vmatpush1.msra.mxu0 %v116
  %126 = vmatprep.subr.mxu0 0.0
  %127 = vmatpush1.msra.mxu0 %v117
  %128 = vmatprep.subr.mxu0 0.0
  %129 = vmatpush1.msra.mxu0 %v118
  %130 = vmatprep.subr.mxu0 0.0
  %131 = vmatpush1.msra.mxu0 %v119
  %132 = vmatprep.subr.mxu0 0.0
  %133 = vmatpush1.msra.mxu0 0.0
  %134 = vmatprep.subr.mxu0 0.0
  %135 = vmatpush1.msra.mxu0 0.0
  %136 = vmatprep.subr.mxu0 0.0
  %137 = vmatpush1.msra.mxu0 0.0
  %138 = vmatprep.subr.mxu0 0.0
  %139 = vmatpush1.msra.mxu0 0.0
  %140 = vmatprep.subr.mxu0 0.0
  %141 = vmatpush1.msra.mxu0 0.0
  %142 = vmatprep.subr.mxu0 0.0
  %143 = vmatpush1.msra.mxu0 0.0
  %144 = vmatprep.subr.mxu0 0.0
  %145 = vmatpush1.msra.mxu0 0.0
  %146 = vmatprep.subr.mxu0 0.0
  %147 = vmatpush1.msra.mxu0 0.0
  %148 = vmatprep.subr.mxu0 0.0
  %149 = vmatpush1.msra.mxu0 0.0
  %150 = vmatprep.subr.mxu0 0.0
  %151 = vmatpush1.msra.mxu0 0.0
  %152 = vmatprep.subr.mxu0 0.0
  %153 = vmatpush1.msra.mxu0 0.0
  %154 = vmatprep.subr.mxu0 0.0
  %155 = vmatpush1.msra.mxu0 0.0
  %156 = vmatprep.subr.mxu0 0.0
  %157 = vmatpush1.msra.mxu0 0.0
  %158 = vmatprep.subr.mxu0 0.0
  %159 = vmatpush1.msra.mxu0 0.0
  %160 = vmatprep.subr.mxu0 0.0
  %161 = vmatpush1.msra.mxu0 0.0
  %162 = vmatprep.subr.mxu0 0.0
  %163 = vmatpush1.msra.mxu0 0.0
  %164 = vmatprep.subr.mxu0 0.0
  %165 = vmatpush1.msra.mxu0 0.0
  %166 = vmatprep.subr.mxu0 0.0
  %167 = vmatpush1.msra.mxu0 0.0
  %168 = vmatprep.subr.mxu0 0.0
  %169 = vmatpush1.msra.mxu0 0.0
  %170 = vmatprep.subr.mxu0 0.0
  %171 = vmatpush1.msra.mxu0 0.0
  %172 = vmatprep.subr.mxu0 0.0
  %173 = vmatpush1.msra.mxu0 0.0
  %174 = vmatprep.subr.mxu0 0.0
  %175 = vmatpush1.msra.mxu0 0.0
  %176 = vmatprep.subr.mxu0 0.0
  %177 = vmatpush1.msra.mxu0 0.0
  %178 = vmatprep.subr.mxu0 0.0
  %179 = vmatpush1.msra.mxu0 0.0
  %180 = vmatprep.subr.mxu0 0.0
  %181 = vmatpush1.msra.mxu0 0.0
  %182 = vmatprep.subr.mxu0 0.0
  %183 = vmatpush1.msra.mxu0 0.0
  %184 = vmatprep.subr.mxu0 0.0
  %185 = vmatpush1.msra.mxu0 0.0
  %186 = vmatprep.subr.mxu0 0.0
  %187 = vmatpush1.msra.mxu0 0.0
  %188 = vmatprep.mubr.f32.mxu0 0.0
  %189 = vmatmul.mubr.f32.gmra.mrb[0].mxu0 %v122
  %v190 = vpop.f32.mrb[0].mxu0
  %v191 = vadd.f32 0.0, %v190
  %v192 = vpop.f32.mrb[0].mxu0
  %193 = vdwg.mxu0
  %v194 = vadd.f32 %v108, %v191
  %v195 = vtanh.pop %v194
  %v197 = vsel %vm120, %v195, 0
  %199 = vmatprep.subr.mxu0 0.0
  %200 = vmatpush1.msra.mxu0 %v116
  %201 = vmatprep.subr.mxu0 0.0
  %202 = vmatpush1.msra.mxu0 %v117
  %203 = vmatprep.subr.mxu0 0.0
  %204 = vmatpush1.msra.mxu0 %v118
  %205 = vmatprep.subr.mxu0 0.0
  %206 = vmatpush1.msra.mxu0 %v119
  %207 = vmatprep.subr.mxu0 0.0
  %208 = vmatpush1.msra.mxu0 0.0
  %209 = vmatprep.subr.mxu0 0.0
  %210 = vmatpush1.msra.mxu0 0.0
  %211 = vmatprep.subr.mxu0 0.0
  %212 = vmatpush1.msra.mxu0 0.0
  %213 = vmatprep.subr.mxu0 0.0
  %214 = vmatpush1.msra.mxu0 0.0
  %215 = vmatprep.subr.mxu0 0.0
  %216 = vmatpush1.msra.mxu0 0.0
  %217 = vmatprep.subr.mxu0 0.0
  %218 = vmatpush1.msra.mxu0 0.0
  %219 = vmatprep.subr.mxu0 0.0
  %220 = vmatpush1.msra.mxu0 0.0
  %221 = vmatprep.subr.mxu0 0.0
  %222 = vmatpush1.msra.mxu0 0.0
  %223 = vmatprep.subr.mxu0 0.0
  %224 = vmatpush1.msra.mxu0 0.0
  %225 = vmatprep.subr.mxu0 0.0
  %226 = vmatpush1.msra.mxu0 0.0
  %227 = vmatprep.subr.mxu0 0.0
  %228 = vmatpush1.msra.mxu0 0.0
  %229 = vmatprep.subr.mxu0 0.0
  %230 = vmatpush1.msra.mxu0 0.0
  %231 = vmatprep.subr.mxu0 0.0
  %232 = vmatpush1.msra.mxu0 0.0
  %233 = vmatprep.subr.mxu0 0.0
  %234 = vmatpush1.msra.mxu0 0.0
  %235 = vmatprep.subr.mxu0 0.0
  %236 = vmatpush1.msra.mxu0 0.0
  %237 = vmatprep.subr.mxu0 0.0
  %238 = vmatpush1.msra.mxu0 0.0
  %239 = vmatprep.subr.mxu0 0.0
  %240 = vmatpush1.msra.mxu0 0.0
  %241 = vmatprep.subr.mxu0 0.0
  %242 = vmatpush1.msra.mxu0 0.0
  %243 = vmatprep.subr.mxu0 0.0
  %244 = vmatpush1.msra.mxu0 0.0
  %245 = vmatprep.subr.mxu0 0.0
  %246 = vmatpush1.msra.mxu0 0.0
  %247 = vmatprep.subr.mxu0 0.0
  %248 = vmatpush1.msra.mxu0 0.0
  %249 = vmatprep.subr.mxu0 0.0
  %250 = vmatpush1.msra.mxu0 0.0
  %251 = vmatprep.subr.mxu0 0.0
  %252 = vmatpush1.msra.mxu0 0.0
  %253 = vmatprep.subr.mxu0 0.0
  %254 = vmatpush1.msra.mxu0 0.0
  %255 = vmatprep.subr.mxu0 0.0
  %256 = vmatpush1.msra.mxu0 0.0
  %257 = vmatprep.subr.mxu0 0.0
  %258 = vmatpush1.msra.mxu0 0.0
  %259 = vmatprep.subr.mxu0 0.0
  %260 = vmatpush1.msra.mxu0 0.0
  %261 = vmatprep.subr.mxu0 0.0
  %262 = vmatpush1.msra.mxu0 0.0
  %263 = vmatprep.mubr.f32.mxu0 0.0
  %264 = vmatmul.mubr.f32.gmra.mrb[0].mxu0 %v197
  %v265 = vpop.f32.mrb[0].mxu0
  %v266 = vadd.f32 0.0, %v265
  %v267 = vpop.f32.mrb[0].mxu0
  %268 = vdwg.mxu0
  %v270 = vrot.slane %v266, 6
  %v272 = vadd.f32 %v108, %v270
  %v273 = vtanh.pop %v272
  %v275 = vrot.slane %v273, 2
  %v276 = vsel %vm120, %v275, 0
  %278 = vmatprep.subr.mxu0 0.0
  %279 = vmatpush1.msra.mxu0 %v116
  %280 = vmatprep.subr.mxu0 0.0
  %281 = vmatpush1.msra.mxu0 %v117
  %282 = vmatprep.subr.mxu0 0.0
  %283 = vmatpush1.msra.mxu0 %v118
  %284 = vmatprep.subr.mxu0 0.0
  %285 = vmatpush1.msra.mxu0 %v119
  %286 = vmatprep.subr.mxu0 0.0
  %287 = vmatpush1.msra.mxu0 0.0
  %288 = vmatprep.subr.mxu0 0.0
  %289 = vmatpush1.msra.mxu0 0.0
  %290 = vmatprep.subr.mxu0 0.0
  %291 = vmatpush1.msra.mxu0 0.0
  %292 = vmatprep.subr.mxu0 0.0
  %293 = vmatpush1.msra.mxu0 0.0
  %294 = vmatprep.subr.mxu0 0.0
  %295 = vmatpush1.msra.mxu0 0.0
  %296 = vmatprep.subr.mxu0 0.0
  %297 = vmatpush1.msra.mxu0 0.0
  %298 = vmatprep.subr.mxu0 0.0
  %299 = vmatpush1.msra.mxu0 0.0
  %300 = vmatprep.subr.mxu0 0.0
  %301 = vmatpush1.msra.mxu0 0.0
  %302 = vmatprep.subr.mxu0 0.0
  %303 = vmatpush1.msra.mxu0 0.0
  %304 = vmatprep.subr.mxu0 0.0
  %305 = vmatpush1.msra.mxu0 0.0
  %306 = vmatprep.subr.mxu0 0.0
  %307 = vmatpush1.msra.mxu0 0.0
  %308 = vmatprep.subr.mxu0 0.0
  %309 = vmatpush1.msra.mxu0 0.0
  %310 = vmatprep.subr.mxu0 0.0
  %311 = vmatpush1.msra.mxu0 0.0
  %312 = vmatprep.subr.mxu0 0.0
  %313 = vmatpush1.msra.mxu0 0.0
  %314 = vmatprep.subr.mxu0 0.0
  %315 = vmatpush1.msra.mxu0 0.0
  %316 = vmatprep.subr.mxu0 0.0
  %317 = vmatpush1.msra.mxu0 0.0
  %318 = vmatprep.subr.mxu0 0.0
  %319 = vmatpush1.msra.mxu0 0.0
  %320 = vmatprep.subr.mxu0 0.0
  %321 = vmatpush1.msra.mxu0 0.0
  %322 = vmatprep.subr.mxu0 0.0
  %323 = vmatpush1.msra.mxu0 0.0
  %324 = vmatprep.subr.mxu0 0.0
  %325 = vmatpush1.msra.mxu0 0.0
  %326 = vmatprep.subr.mxu0 0.0
  %327 = vmatpush1.msra.mxu0 0.0
  %328 = vmatprep.subr.mxu0 0.0
  %329 = vmatpush1.msra.mxu0 0.0
  %330 = vmatprep.subr.mxu0 0.0
  %331 = vmatpush1.msra.mxu0 0.0
  %332 = vmatprep.subr.mxu0 0.0
  %333 = vmatpush1.msra.mxu0 0.0
  %334 = vmatprep.subr.mxu0 0.0
  %335 = vmatpush1.msra.mxu0 0.0
  %336 = vmatprep.subr.mxu0 0.0
  %337 = vmatpush1.msra.mxu0 0.0
  %338 = vmatprep.subr.mxu0 0.0
  %339 = vmatpush1.msra.mxu0 0.0
  %340 = vmatprep.subr.mxu0 0.0
  %341 = vmatpush1.msra.mxu0 0.0
  %342 = vmatprep.mubr.f32.mxu0 0.0
  %343 = vmatmul.mubr.f32.gmra.mrb[0].mxu0 %v276
  %v344 = vpop.f32.mrb[0].mxu0
  %v345 = vadd.f32 0.0, %v344
  %v346 = vpop.f32.mrb[0].mxu0
  %347 = vdwg.mxu0
  %v349 = vrot.slane %v345, 4
  %v351 = vadd.f32 %v108, %v349
  %v352 = vtanh.pop %v351
  %v354 = vrot.slane %v352, 4
  %v355 = vsel %vm120, %v354, 0
  %357 = vmatprep.subr.mxu0 0.0
  %358 = vmatpush1.msra.mxu0 %v116
  %359 = vmatprep.subr.mxu0 0.0
  %360 = vmatpush1.msra.mxu0 %v117
  %361 = vmatprep.subr.mxu0 0.0
  %362 = vmatpush1.msra.mxu0 %v118
  %363 = vmatprep.subr.mxu0 0.0
  %364 = vmatpush1.msra.mxu0 %v119
  %365 = vmatprep.subr.mxu0 0.0
  %366 = vmatpush1.msra.mxu0 0.0
  %367 = vmatprep.subr.mxu0 0.0
  %368 = vmatpush1.msra.mxu0 0.0
  %369 = vmatprep.subr.mxu0 0.0
  %370 = vmatpush1.msra.mxu0 0.0
  %371 = vmatprep.subr.mxu0 0.0
  %372 = vmatpush1.msra.mxu0 0.0
  %373 = vmatprep.subr.mxu0 0.0
  %374 = vmatpush1.msra.mxu0 0.0
  %375 = vmatprep.subr.mxu0 0.0
  %376 = vmatpush1.msra.mxu0 0.0
  %377 = vmatprep.subr.mxu0 0.0
  %378 = vmatpush1.msra.mxu0 0.0
  %379 = vmatprep.subr.mxu0 0.0
  %380 = vmatpush1.msra.mxu0 0.0
  %381 = vmatprep.subr.mxu0 0.0
  %382 = vmatpush1.msra.mxu0 0.0
  %383 = vmatprep.subr.mxu0 0.0
  %384 = vmatpush1.msra.mxu0 0.0
  %385 = vmatprep.subr.mxu0 0.0
  %386 = vmatpush1.msra.mxu0 0.0
  %387 = vmatprep.subr.mxu0 0.0
  %388 = vmatpush1.msra.mxu0 0.0
  %389 = vmatprep.subr.mxu0 0.0
  %390 = vmatpush1.msra.mxu0 0.0
  %391 = vmatprep.subr.mxu0 0.0
  %392 = vmatpush1.msra.mxu0 0.0
  %393 = vmatprep.subr.mxu0 0.0
  %394 = vmatpush1.msra.mxu0 0.0
  %395 = vmatprep.subr.mxu0 0.0
  %396 = vmatpush1.msra.mxu0 0.0
  %397 = vmatprep.subr.mxu0 0.0
  %398 = vmatpush1.msra.mxu0 0.0
  %399 = vmatprep.subr.mxu0 0.0
  %400 = vmatpush1.msra.mxu0 0.0
  %401 = vmatprep.subr.mxu0 0.0
  %402 = vmatpush1.msra.mxu0 0.0
  %403 = vmatprep.subr.mxu0 0.0
  %404 = vmatpush1.msra.mxu0 0.0
  %405 = vmatprep.subr.mxu0 0.0
  %406 = vmatpush1.msra.mxu0 0.0
  %407 = vmatprep.subr.mxu0 0.0
  %408 = vmatpush1.msra.mxu0 0.0
  %409 = vmatprep.subr.mxu0 0.0
  %410 = vmatpush1.msra.mxu0 0.0
  %411 = vmatprep.subr.mxu0 0.0
  %412 = vmatpush1.msra.mxu0 0.0
  %413 = vmatprep.subr.mxu0 0.0
  %414 = vmatpush1.msra.mxu0 0.0
  %415 = vmatprep.subr.mxu0 0.0
  %416 = vmatpush1.msra.mxu0 0.0
  %417 = vmatprep.subr.mxu0 0.0
  %418 = vmatpush1.msra.mxu0 0.0
  %419 = vmatprep.subr.mxu0 0.0
  %420 = vmatpush1.msra.mxu0 0.0
  %421 = vmatprep.mubr.f32.mxu0 0.0
  %422 = vmatmul.mubr.f32.gmra.mrb[0].mxu0 %v355
  %v423 = vpop.f32.mrb[0].mxu0
  %v424 = vadd.f32 0.0, %v423
  %v425 = vpop.f32.mrb[0].mxu0
  %426 = vdwg.mxu0
  %v428 = vrot.slane %v424, 2
  %v430 = vadd.f32 %v108, %v428
  %v431 = vtanh.pop %v430
  %v433 = vrot.slane %v431, 6
  %v434 = vsel %vm120, %v433, 0
  %436 = vmatprep.subr.mxu0 0.0
  %437 = vmatpush1.msra.mxu0 %v116
  %438 = vmatprep.subr.mxu0 0.0
  %439 = vmatpush1.msra.mxu0 %v117
  %440 = vmatprep.subr.mxu0 0.0
  %441 = vmatpush1.msra.mxu0 %v118
  %442 = vmatprep.subr.mxu0 0.0
  %443 = vmatpush1.msra.mxu0 %v119
  %444 = vmatprep.subr.mxu0 0.0
  %445 = vmatpush1.msra.mxu0 0.0
  %446 = vmatprep.subr.mxu0 0.0
  %447 = vmatpush1.msra.mxu0 0.0
  %448 = vmatprep.subr.mxu0 0.0
  %449 = vmatpush1.msra.mxu0 0.0
  %450 = vmatprep.subr.mxu0 0.0
  %451 = vmatpush1.msra.mxu0 0.0
  %452 = vmatprep.subr.mxu0 0.0
  %453 = vmatpush1.msra.mxu0 0.0
  %454 = vmatprep.subr.mxu0 0.0
  %455 = vmatpush1.msra.mxu0 0.0
  %456 = vmatprep.subr.mxu0 0.0
  %457 = vmatpush1.msra.mxu0 0.0
  %458 = vmatprep.subr.mxu0 0.0
  %459 = vmatpush1.msra.mxu0 0.0
  %460 = vmatprep.subr.mxu0 0.0
  %461 = vmatpush1.msra.mxu0 0.0
  %462 = vmatprep.subr.mxu0 0.0
  %463 = vmatpush1.msra.mxu0 0.0
  %464 = vmatprep.subr.mxu0 0.0
  %465 = vmatpush1.msra.mxu0 0.0
  %466 = vmatprep.subr.mxu0 0.0
  %467 = vmatpush1.msra.mxu0 0.0
  %468 = vmatprep.subr.mxu0 0.0
  %469 = vmatpush1.msra.mxu0 0.0
  %470 = vmatprep.subr.mxu0 0.0
  %471 = vmatpush1.msra.mxu0 0.0
  %472 = vmatprep.subr.mxu0 0.0
  %473 = vmatpush1.msra.mxu0 0.0
  %474 = vmatprep.subr.mxu0 0.0
  %475 = vmatpush1.msra.mxu0 0.0
  %476 = vmatprep.subr.mxu0 0.0
  %477 = vmatpush1.msra.mxu0 0.0
  %478 = vmatprep.subr.mxu0 0.0
  %479 = vmatpush1.msra.mxu0 0.0
  %480 = vmatprep.subr.mxu0 0.0
  %481 = vmatpush1.msra.mxu0 0.0
  %482 = vmatprep.subr.mxu0 0.0
  %483 = vmatpush1.msra.mxu0 0.0
  %484 = vmatprep.subr.mxu0 0.0
  %485 = vmatpush1.msra.mxu0 0.0
  %486 = vmatprep.subr.mxu0 0.0
  %487 = vmatpush1.msra.mxu0 0.0
  %488 = vmatprep.subr.mxu0 0.0
  %489 = vmatpush1.msra.mxu0 0.0
  %490 = vmatprep.subr.mxu0 0.0
  %491 = vmatpush1.msra.mxu0 0.0
  %492 = vmatprep.subr.mxu0 0.0
  %493 = vmatpush1.msra.mxu0 0.0
  %494 = vmatprep.subr.mxu0 0.0
  %495 = vmatpush1.msra.mxu0 0.0
  %496 = vmatprep.subr.mxu0 0.0
  %497 = vmatpush1.msra.mxu0 0.0
  %498 = vmatprep.subr.mxu0 0.0
  %499 = vmatpush1.msra.mxu0 0.0
  %500 = vmatprep.mubr.f32.mxu0 0.0
  %501 = vmatmul.mubr.f32.gmra.mrb[0].mxu0 %v434
  %v502 = vpop.f32.mrb[0].mxu0
  %v503 = vadd.f32 0.0, %v502
  %v504 = vpop.f32.mrb[0].mxu0
  %505 = vdwg.mxu0
  %v506 = vadd.f32 %v113, %v503
  %v507 = vtanh.pop %v506
  %v509 = vsel %vm120, %v507, 0
  %511 = vmatprep.subr.mxu0 0.0
  %512 = vmatpush1.msra.mxu0 %v116
  %513 = vmatprep.subr.mxu0 0.0
  %514 = vmatpush1.msra.mxu0 %v117
  %515 = vmatprep.subr.mxu0 0.0
  %516 = vmatpush1.msra.mxu0 %v118
  %517 = vmatprep.subr.mxu0 0.0
  %518 = vmatpush1.msra.mxu0 %v119
  %519 = vmatprep.subr.mxu0 0.0
  %520 = vmatpush1.msra.mxu0 0.0
  %521 = vmatprep.subr.mxu0 0.0
  %522 = vmatpush1.msra.mxu0 0.0
  %523 = vmatprep.subr.mxu0 0.0
  %524 = vmatpush1.msra.mxu0 0.0
  %525 = vmatprep.subr.mxu0 0.0
  %526 = vmatpush1.msra.mxu0 0.0
  %527 = vmatprep.subr.mxu0 0.0
  %528 = vmatpush1.msra.mxu0 0.0
  %529 = vmatprep.subr.mxu0 0.0
  %530 = vmatpush1.msra.mxu0 0.0
  %531 = vmatprep.subr.mxu0 0.0
  %532 = vmatpush1.msra.mxu0 0.0
  %533 = vmatprep.subr.mxu0 0.0
  %534 = vmatpush1.msra.mxu0 0.0
  %535 = vmatprep.subr.mxu0 0.0
  %536 = vmatpush1.msra.mxu0 0.0
  %537 = vmatprep.subr.mxu0 0.0
  %538 = vmatpush1.msra.mxu0 0.0
  %539 = vmatprep.subr.mxu0 0.0
  %540 = vmatpush1.msra.mxu0 0.0
  %541 = vmatprep.subr.mxu0 0.0
  %542 = vmatpush1.msra.mxu0 0.0
  %543 = vmatprep.subr.mxu0 0.0
  %544 = vmatpush1.msra.mxu0 0.0
  %545 = vmatprep.subr.mxu0 0.0
  %546 = vmatpush1.msra.mxu0 0.0
  %547 = vmatprep.subr.mxu0 0.0
  %548 = vmatpush1.msra.mxu0 0.0
  %549 = vmatprep.subr.mxu0 0.0
  %550 = vmatpush1.msra.mxu0 0.0
  %551 = vmatprep.subr.mxu0 0.0
  %552 = vmatpush1.msra.mxu0 0.0
  %553 = vmatprep.subr.mxu0 0.0
  %554 = vmatpush1.msra.mxu0 0.0
  %555 = vmatprep.subr.mxu0 0.0
  %556 = vmatpush1.msra.mxu0 0.0
  %557 = vmatprep.subr.mxu0 0.0
  %558 = vmatpush1.msra.mxu0 0.0
  %559 = vmatprep.subr.mxu0 0.0
  %560 = vmatpush1.msra.mxu0 0.0
  %561 = vmatprep.subr.mxu0 0.0
  %562 = vmatpush1.msra.mxu0 0.0
  %563 = vmatprep.subr.mxu0 0.0
  %564 = vmatpush1.msra.mxu0 0.0
  %565 = vmatprep.subr.mxu0 0.0
  %566 = vmatpush1.msra.mxu0 0.0
  %567 = vmatprep.subr.mxu0 0.0
  %568 = vmatpush1.msra.mxu0 0.0
  %569 = vmatprep.subr.mxu0 0.0
  %570 = vmatpush1.msra.mxu0 0.0
  %571 = vmatprep.subr.mxu0 0.0
  %572 = vmatpush1.msra.mxu0 0.0
  %573 = vmatprep.subr.mxu0 0.0
  %574 = vmatpush1.msra.mxu0 0.0
  %575 = vmatprep.mubr.f32.mxu0 0.0
  %576 = vmatmul.mubr.f32.gmra.mrb[0].mxu0 %v509
  %v577 = vpop.f32.mrb[0].mxu0
  %v578 = vadd.f32 0.0, %v577
  %v579 = vpop.f32.mrb[0].mxu0
  %580 = vdwg.mxu0
  %v582 = vrot.slane %v578, 6
  %v584 = vadd.f32 %v113, %v582
  %v585 = vtanh.pop %v584
  %v587 = vrot.slane %v585, 2
  %v588 = vsel %vm120, %v587, 0
  %590 = vmatprep.subr.mxu0 0.0
  %591 = vmatpush1.msra.mxu0 %v116
  %592 = vmatprep.subr.mxu0 0.0
  %593 = vmatpush1.msra.mxu0 %v117
  %594 = vmatprep.subr.mxu0 0.0
  %595 = vmatpush1.msra.mxu0 %v118
  %596 = vmatprep.subr.mxu0 0.0
  %597 = vmatpush1.msra.mxu0 %v119
  %598 = vmatprep.subr.mxu0 0.0
  %599 = vmatpush1.msra.mxu0 0.0
  %600 = vmatprep.subr.mxu0 0.0
  %601 = vmatpush1.msra.mxu0 0.0
  %602 = vmatprep.subr.mxu0 0.0
  %603 = vmatpush1.msra.mxu0 0.0
  %604 = vmatprep.subr.mxu0 0.0
  %605 = vmatpush1.msra.mxu0 0.0
  %606 = vmatprep.subr.mxu0 0.0
  %607 = vmatpush1.msra.mxu0 0.0
  %608 = vmatprep.subr.mxu0 0.0
  %609 = vmatpush1.msra.mxu0 0.0
  %610 = vmatprep.subr.mxu0 0.0
  %611 = vmatpush1.msra.mxu0 0.0
  %612 = vmatprep.subr.mxu0 0.0
  %613 = vmatpush1.msra.mxu0 0.0
  %614 = vmatprep.subr.mxu0 0.0
  %615 = vmatpush1.msra.mxu0 0.0
  %616 = vmatprep.subr.mxu0 0.0
  %617 = vmatpush1.msra.mxu0 0.0
  %618 = vmatprep.subr.mxu0 0.0
  %619 = vmatpush1.msra.mxu0 0.0
  %620 = vmatprep.subr.mxu0 0.0
  %621 = vmatpush1.msra.mxu0 0.0
  %622 = vmatprep.subr.mxu0 0.0
  %623 = vmatpush1.msra.mxu0 0.0
  %624 = vmatprep.subr.mxu0 0.0
  %625 = vmatpush1.msra.mxu0 0.0
  %626 = vmatprep.subr.mxu0 0.0
  %627 = vmatpush1.msra.mxu0 0.0
  %628 = vmatprep.subr.mxu0 0.0
  %629 = vmatpush1.msra.mxu0 0.0
  %630 = vmatprep.subr.mxu0 0.0
  %631 = vmatpush1.msra.mxu0 0.0
  %632 = vmatprep.subr.mxu0 0.0
  %633 = vmatpush1.msra.mxu0 0.0
  %634 = vmatprep.subr.mxu0 0.0
  %635 = vmatpush1.msra.mxu0 0.0
  %636 = vmatprep.subr.mxu0 0.0
  %637 = vmatpush1.msra.mxu0 0.0
  %638 = vmatprep.subr.mxu0 0.0
  %639 = vmatpush1.msra.mxu0 0.0
  %640 = vmatprep.subr.mxu0 0.0
  %641 = vmatpush1.msra.mxu0 0.0
  %642 = vmatprep.subr.mxu0 0.0
  %643 = vmatpush1.msra.mxu0 0.0
  %644 = vmatprep.subr.mxu0 0.0
  %645 = vmatpush1.msra.mxu0 0.0
  %646 = vmatprep.subr.mxu0 0.0
  %647 = vmatpush1.msra.mxu0 0.0
  %648 = vmatprep.subr.mxu0 0.0
  %649 = vmatpush1.msra.mxu0 0.0
  %650 = vmatprep.subr.mxu0 0.0
  %651 = vmatpush1.msra.mxu0 0.0
  %652 = vmatprep.subr.mxu0 0.0
  %653 = vmatpush1.msra.mxu0 0.0
  %654 = vmatprep.mubr.f32.mxu0 0.0
  %655 = vmatmul.mubr.f32.gmra.mrb[0].mxu0 %v588
  %v656 = vpop.f32.mrb[0].mxu0
  %v657 = vadd.f32 0.0, %v656
  %v658 = vpop.f32.mrb[0].mxu0
  %659 = vdwg.mxu0
  %v661 = vrot.slane %v657, 4
  %v663 = vadd.f32 %v113, %v661
  %v664 = vtanh.pop %v663
  %v666 = vrot.slane %v664, 4
  %v667 = vsel %vm120, %v666, 0
  %669 = vmatprep.subr.mxu0 0.0
  %670 = vmatpush1.msra.mxu0 %v116
  %671 = vmatprep.subr.mxu0 0.0
  %672 = vmatpush1.msra.mxu0 %v117
  %673 = vmatprep.subr.mxu0 0.0
  %674 = vmatpush1.msra.mxu0 %v118
  %675 = vmatprep.subr.mxu0 0.0
  %676 = vmatpush1.msra.mxu0 %v119
  %677 = vmatprep.subr.mxu0 0.0
  %678 = vmatpush1.msra.mxu0 0.0
  %679 = vmatprep.subr.mxu0 0.0
  %680 = vmatpush1.msra.mxu0 0.0
  %681 = vmatprep.subr.mxu0 0.0
  %682 = vmatpush1.msra.mxu0 0.0
  %683 = vmatprep.subr.mxu0 0.0
  %684 = vmatpush1.msra.mxu0 0.0
  %685 = vmatprep.subr.mxu0 0.0
  %686 = vmatpush1.msra.mxu0 0.0
  %687 = vmatprep.subr.mxu0 0.0
  %688 = vmatpush1.msra.mxu0 0.0
  %689 = vmatprep.subr.mxu0 0.0
  %690 = vmatpush1.msra.mxu0 0.0
  %691 = vmatprep.subr.mxu0 0.0
  %692 = vmatpush1.msra.mxu0 0.0
  %693 = vmatprep.subr.mxu0 0.0
  %694 = vmatpush1.msra.mxu0 0.0
  %695 = vmatprep.subr.mxu0 0.0
  %696 = vmatpush1.msra.mxu0 0.0
  %697 = vmatprep.subr.mxu0 0.0
  %698 = vmatpush1.msra.mxu0 0.0
  %699 = vmatprep.subr.mxu0 0.0
  %700 = vmatpush1.msra.mxu0 0.0
  %701 = vmatprep.subr.mxu0 0.0
  %702 = vmatpush1.msra.mxu0 0.0
  %703 = vmatprep.subr.mxu0 0.0
  %704 = vmatpush1.msra.mxu0 0.0
  %705 = vmatprep.subr.mxu0 0.0
  %706 = vmatpush1.msra.mxu0 0.0
  %707 = vmatprep.subr.mxu0 0.0
  %708 = vmatpush1.msra.mxu0 0.0
  %709 = vmatprep.subr.mxu0 0.0
  %710 = vmatpush1.msra.mxu0 0.0
  %711 = vmatprep.subr.mxu0 0.0
  %712 = vmatpush1.msra.mxu0 0.0
  %713 = vmatprep.subr.mxu0 0.0
  %714 = vmatpush1.msra.mxu0 0.0
  %715 = vmatprep.subr.mxu0 0.0
  %716 = vmatpush1.msra.mxu0 0.0
  %717 = vmatprep.subr.mxu0 0.0
  %718 = vmatpush1.msra.mxu0 0.0
  %719 = vmatprep.subr.mxu0 0.0
  %720 = vmatpush1.msra.mxu0 0.0
  %721 = vmatprep.subr.mxu0 0.0
  %722 = vmatpush1.msra.mxu0 0.0
  %723 = vmatprep.subr.mxu0 0.0
  %724 = vmatpush1.msra.mxu0 0.0
  %725 = vmatprep.subr.mxu0 0.0
  %726 = vmatpush1.msra.mxu0 0.0
  %727 = vmatprep.subr.mxu0 0.0
  %728 = vmatpush1.msra.mxu0 0.0
  %729 = vmatprep.subr.mxu0 0.0
  %730 = vmatpush1.msra.mxu0 0.0
  %731 = vmatprep.subr.mxu0 0.0
  %732 = vmatpush1.msra.mxu0 0.0
  %733 = vmatprep.mubr.f32.mxu0 0.0
  %734 = vmatmul.mubr.f32.gmra.mrb[0].mxu0 %v667
  %v735 = vpop.f32.mrb[0].mxu0
  %v736 = vadd.f32 0.0, %v735
  %v737 = vpop.f32.mrb[0].mxu0
  %738 = vdwg.mxu0
  %v740 = vrot.slane %v736, 2
  %v742 = vadd.f32 %v113, %v740
  %v743 = vtanh.pop %v742
  %vm744 = vcmask 1041408
  %v745 = vsel %vm744, %v195, %v273
  %vm746 = vcmask 1043456
  %v747 = vsel %vm746, %v745, %v352
  %vm748 = vcmask 1045504
  %v749 = vsel %vm748, %v747, %v431
  %v750 = vsel %vm744, %v507, %v585
  %v751 = vsel %vm746, %v750, %v664
  %v752 = vsel %vm748, %v751, %v743
  %v753 = vld [vmem:[%s4] sm:$0xff]
  %v754 = vld [vmem:[%s4 + $0x8] sm:$0xff]
  %v755 = vld [vmem:[%s4 + $0x10] sm:$0xff]
  %v756 = vld [vmem:[%s4 + $0x18] sm:$0xff]
  %v757 = vld [vmem:[%s5] sm:$0x1]
  %v759 = vlaneseq
  %v760 = vshrl.u32 %v759, 7
  %v761 = vsub.s32 0, %v760
  %v762 = vrot.slane %v757, %v761
  %v765 = vsel %vm120, %v749, 0
  %v768 = vsel %vm120, %v752, 0
  %770 = vmatprep.subr.mxu0 0.0
  %771 = vmatpush1.msra.mxu0 %v753
  %772 = vmatprep.subr.mxu0 0.0
  %773 = vmatpush1.msra.mxu0 %v754
  %774 = vmatprep.subr.mxu0 0.0
  %775 = vmatpush1.msra.mxu0 %v755
  %776 = vmatprep.subr.mxu0 0.0
  %777 = vmatpush1.msra.mxu0 %v756
  %778 = vmatprep.subr.mxu0 0.0
  %779 = vmatpush1.msra.mxu0 0.0
  %780 = vmatprep.subr.mxu0 0.0
  %781 = vmatpush1.msra.mxu0 0.0
  %782 = vmatprep.subr.mxu0 0.0
  %783 = vmatpush1.msra.mxu0 0.0
  %784 = vmatprep.subr.mxu0 0.0
  %785 = vmatpush1.msra.mxu0 0.0
  %786 = vmatprep.subr.mxu0 0.0
  %787 = vmatpush1.msra.mxu0 0.0
  %788 = vmatprep.subr.mxu0 0.0
  %789 = vmatpush1.msra.mxu0 0.0
  %790 = vmatprep.subr.mxu0 0.0
  %791 = vmatpush1.msra.mxu0 0.0
  %792 = vmatprep.subr.mxu0 0.0
  %793 = vmatpush1.msra.mxu0 0.0
  %794 = vmatprep.subr.mxu0 0.0
  %795 = vmatpush1.msra.mxu0 0.0
  %796 = vmatprep.subr.mxu0 0.0
  %797 = vmatpush1.msra.mxu0 0.0
  %798 = vmatprep.subr.mxu0 0.0
  %799 = vmatpush1.msra.mxu0 0.0
  %800 = vmatprep.subr.mxu0 0.0
  %801 = vmatpush1.msra.mxu0 0.0
  %802 = vmatprep.subr.mxu0 0.0
  %803 = vmatpush1.msra.mxu0 0.0
  %804 = vmatprep.subr.mxu0 0.0
  %805 = vmatpush1.msra.mxu0 0.0
  %806 = vmatprep.subr.mxu0 0.0
  %807 = vmatpush1.msra.mxu0 0.0
  %808 = vmatprep.subr.mxu0 0.0
  %809 = vmatpush1.msra.mxu0 0.0
  %810 = vmatprep.subr.mxu0 0.0
  %811 = vmatpush1.msra.mxu0 0.0
  %812 = vmatprep.subr.mxu0 0.0
  %813 = vmatpush1.msra.mxu0 0.0
  %814 = vmatprep.subr.mxu0 0.0
  %815 = vmatpush1.msra.mxu0 0.0
  %816 = vmatprep.subr.mxu0 0.0
  %817 = vmatpush1.msra.mxu0 0.0
  %818 = vmatprep.subr.mxu0 0.0
  %819 = vmatpush1.msra.mxu0 0.0
  %820 = vmatprep.subr.mxu0 0.0
  %821 = vmatpush1.msra.mxu0 0.0
  %822 = vmatprep.subr.mxu0 0.0
  %823 = vmatpush1.msra.mxu0 0.0
  %824 = vmatprep.subr.mxu0 0.0
  %825 = vmatpush1.msra.mxu0 0.0
  %826 = vmatprep.subr.mxu0 0.0
  %827 = vmatpush1.msra.mxu0 0.0
  %828 = vmatprep.subr.mxu0 0.0
  %829 = vmatpush1.msra.mxu0 0.0
  %830 = vmatprep.subr.mxu0 0.0
  %831 = vmatpush1.msra.mxu0 0.0
  %832 = vmatprep.subr.mxu0 0.0
  %833 = vmatpush1.msra.mxu0 0.0
  %834 = vmatprep.mubr.f32.mxu0 0.0
  %835 = vmatmul.mubr.f32.gmra.mrb[0].mxu0 %v765
  %v836 = vpop.f32.mrb[0].mxu0
  %v837 = vadd.f32 %v762, %v836
  %v838 = vpop.f32.mrb[0].mxu0
  %839 = vmatprep.mubr.f32.mxu0 0.0
  %840 = vmatmul.mubr.f32.gmra.mrb[0].mxu0 %v768
  %v841 = vpop.f32.mrb[0].mxu0
  %v842 = vadd.f32 %v762, %v841
  %v843 = vpop.f32.mrb[0].mxu0
  %844 = vdwg.mxu0
  %vm845 = vcmask 31744
  %846 = vst.msk [vmem:[%s6] sm:$0xff] %vm845, %v837
  %847 = vst.msk [vmem:[%s6 + $0x8] sm:$0xff] %vm845, %v842
  // Predicated region
  $region26: #{simple_rnn_forward.1} parent=0 // pred_check
    _
  $region27: #{simple_rnn_forward.1} parent=0 // pred_check_branch
    %849 = sbr.rel (0) target = $region29
  $region28: #{simple_rnn_forward.1} parent=0 // pred_region
    _
  $region29: #{simple_rnn_forward.1} parent=0 // pred_fallthru
    _
  // Predicated region
  $region30: #{simple_rnn_forward.1} parent=0 // pred_check
    _
  $region31: #{simple_rnn_forward.1} parent=0 // pred_check_branch
    %851 = sbr.rel (0) target = $region33
  $region32: #{simple_rnn_forward.1} parent=0 // pred_region
    _
  $region33: #{simple_rnn_forward.1} parent=0 // pred_fallthru
    _

</llo_original>
